<compile_context>
chip_gen: v7x
topology: tpu7x:2x2x1
jax: 0.10.0
libtpu: 0.0.40
codegen_flags: <defaults>
</compile_context>

<pallas_src>
import numpy as np
import jax
import jax.numpy as jnp
from jax import lax
from jax.experimental import pallas as pl
from jax.experimental.pallas import tpu as pltpu


# --------------------------- helpers -----------------------------------------

def _nearest_expansion_np(src, dst, pad=0):
    """One-hot E (src, dst + 2*pad) with E[(p*src)//dst, pad+p] = 1.
    (x @ E) is the exact PyTorch 'nearest' upsample src->dst with `pad` zero
    columns on each side.  numpy only (no device sync)."""
    e = np.zeros((src, dst + 2 * pad), np.float32)
    p = np.arange(dst)
    e[(p * src) // dst, p + pad] = 1.0
    return e


def _vmem_limit_bytes():
    """Generation-aware scoped-VMEM budget: ~3/4 of physical, capped at 96 MiB.
    -> 96 MiB on v5e/v6e (128 MiB physical), 48 MiB on v7x (64 MiB physical)."""
    try:
        cap = int(pltpu.get_tpu_info().vmem_capacity_bytes)
    except Exception:
        cap = 128 * 1024 * 1024
    return int(min(96 * 1024 * 1024, (3 * cap) // 4))


def _pick_row_strip(oh):
    """Output-row strip size: a multiple of 8 that divides OH, else full extent."""
    for s in (8, 16, 32):
        if oh % s == 0:
            return s
    return oh  # full extent is always a legal block


# ----------------------- upsample-only kernel (separable) --------------------

def _upsample_sep_kernel(x_ref, ew_ref, eht_ref, o_ref):
    # x_ref : (C, H, W)      one batch element
    # ew_ref: (W, Wo)  f32   one-hot width expansion
    # eht_ref:(Ho, H)  f32   one-hot height expansion (transposed)
    # o_ref : (C, Ho, Wo)
    c, h, w = x_ref.shape
    # width expansion, all channels batched into the M dimension (M = C*H)
    xw = jnp.dot(x_ref[...].reshape(c * h, w).astype(jnp.float32), ew_ref[...],
                 preferred_element_type=jnp.float32)            # (C*H, Wo)
    eht = eht_ref[...]                                          # (Ho, H)
    for ci in range(c):  # TODO(synk): switch to lax.fori_loop for very large C
        o_ref[ci] = jnp.dot(eht, xw[ci * h:(ci + 1) * h, :],
                            preferred_element_type=jnp.float32).astype(o_ref.dtype)


def nearest_upsample(x, target_size=None):
    b, c, h, w = x.shape
    ho, wo = (2 * h, 2 * w) if target_size is None else tuple(target_size)

    ew = jnp.asarray(_nearest_expansion_np(w, wo))                           # (W, Wo)
    eht = jnp.asarray(np.ascontiguousarray(_nearest_expansion_np(h, ho).T))  # (Ho, H)

    return pl.pallas_call(
        _upsample_sep_kernel,
        out_shape=jax.ShapeDtypeStruct((b, c, ho, wo), x.dtype),
        grid_spec=pltpu.PrefetchScalarGridSpec(
            num_scalar_prefetch=0,
            grid=(b,),
            in_specs=[
                pl.BlockSpec((pl.Squeezed(), c, h, w), lambda i: (i, 0, 0, 0)),
                pl.BlockSpec((w, wo), lambda i: (0, 0)),
                pl.BlockSpec((ho, h), lambda i: (0, 0)),
            ],
            out_specs=pl.BlockSpec((pl.Squeezed(), c, ho, wo),
                                   lambda i: (i, 0, 0, 0)),
        ),
        compiler_params=pltpu.CompilerParams(
            dimension_semantics=("parallel",),
            vmem_limit_bytes=_vmem_limit_bytes()),
    )(x, ew, eht)


# --------------- fused upsample + zero-pad + 3x3 conv kernel -----------------

def _fused_upsample_conv_kernel(x_ref, ewp_ref, ehpt_ref, w_ref, b_ref, o_ref,
                                xs_ref):
    # x_ref  : (Cin, H, W)        one batch element (same block for every strip)
    # ewp_ref: (W, Wp)  f32       one-hot width expansion incl. zero pad
    # ehpt_ref:(Hp, H)  f32       one-hot height expansion incl. zero pad (transposed)
    # w_ref  : (9, Cout, Cin) f32 conv weights, tap-major (kh*3+kw)
    # b_ref  : (Cout, 1) f32      bias
    # o_ref  : (Cout, STRIP, OW)  output rows [r0, r0+STRIP) of this batch element
    # xs_ref : (3, Cin, Hp, OW)   VMEM scratch: kw-shifted upsampled+padded maps
    cin, h, w = x_ref.shape
    cout, strip, ow = o_ref.shape

    # Build the upsampled+padded activation (and its 3 kw-shifted copies) ONCE
    # per batch element, entirely in VMEM (no HBM round-trip).
    @pl.when(pl.program_id(1) == 0)
    def _build():
        # width expansion: all channels batched into M (one matmul)
        xw = jnp.dot(x_ref[...].reshape(cin * h, w).astype(jnp.float32),
                     ewp_ref[...], preferred_element_type=jnp.float32)   # (Cin*H, Wp)
        ehpt = ehpt_ref[...]                                             # (Hp, H)
        for ci in range(cin):  # TODO(synk): lax.fori_loop for large Cin
            plane = jnp.dot(ehpt, xw[ci * h:(ci + 1) * h, :],
                            preferred_element_type=jnp.float32)          # (Hp, Wp)
            for kw in range(3):  # explicit shifted copies, built once per channel
                xs_ref[kw, ci] = plane[:, kw:kw + ow]

    r0 = pl.multiple_of(pl.program_id(1) * strip, strip)
    # strip+2 input rows cover all kh taps for this strip of output rows.
    slabs = [xs_ref[kw, :, pl.ds(r0, strip + 2), :] for kw in range(3)]  # (Cin, strip+2, OW)
    wall = w_ref[...]                                                    # (9, Cout, Cin)
    bias = jnp.broadcast_to(b_ref[...], (cout, ow))                      # hoisted

    # 3x3 conv: per output row, 9 MXU contractions over Cin.
    for j in range(strip):
        acc = bias
        for k in range(9):
            kh, kw = divmod(k, 3)
            rhs = slabs[kw][:, j + kh, :]                                # (Cin, OW)
            acc = acc + jnp.dot(wall[k], rhs,
                                preferred_element_type=jnp.float32)
        o_ref[:, j, :] = acc.astype(o_ref.dtype)


def upsample_conv3x3(x, weight, bias, padding=1, target_size=None):
    b, cin, h, w = x.shape
    cout = weight.shape[0]
    assert weight.shape[1:] == (cin, 3, 3), "expected a 3x3 conv"
    ho, wo = (2 * h, 2 * w) if target_size is None else tuple(target_size)
    hp, wp = ho + 2 * padding, wo + 2 * padding
    oh, ow = hp - 2, wp - 2  # 3x3 kernel, stride 1
    assert oh >= 1 and ow >= 1, "conv output would be empty"

    strip = _pick_row_strip(oh)
    n_strips = oh // strip

    ewp = jnp.asarray(_nearest_expansion_np(w, wo, padding))                          # (W, Wp)
    ehpt = jnp.asarray(np.ascontiguousarray(_nearest_expansion_np(h, ho, padding).T)) # (Hp, H)
    w9 = jnp.asarray(weight, jnp.float32).transpose(2, 3, 0, 1).reshape(9, cout, cin)
    b2 = jnp.asarray(bias, jnp.float32).reshape(cout, 1)

    # TODO(synk): at production channel counts (cin/cout >= 128) add a cout (and
    # cin) tile axis to the grid so scratch + output blocks fit v7x's 64 MiB VMEM.
    return pl.pallas_call(
        _fused_upsample_conv_kernel,
        out_shape=jax.ShapeDtypeStruct((b, cout, oh, ow), x.dtype),
        grid_spec=pltpu.PrefetchScalarGridSpec(
            num_scalar_prefetch=0,
            grid=(b, n_strips),
            in_specs=[
                pl.BlockSpec((pl.Squeezed(), cin, h, w), lambda i, r: (i, 0, 0, 0)),
                pl.BlockSpec((w, wp), lambda i, r: (0, 0)),
                pl.BlockSpec((hp, h), lambda i, r: (0, 0)),
                pl.BlockSpec((9, cout, cin), lambda i, r: (0, 0, 0)),
                pl.BlockSpec((cout, 1), lambda i, r: (0, 0)),
            ],
            out_specs=pl.BlockSpec((pl.Squeezed(), cout, strip, ow),
                                   lambda i, r: (i, 0, r, 0)),
            scratch_shapes=[pltpu.VMEM((3, cin, hp, ow), jnp.float32)],
        ),
        compiler_params=pltpu.CompilerParams(
            dimension_semantics=("parallel", "arbitrary"),
            vmem_limit_bytes=_vmem_limit_bytes()),
    )(x, ewp, ehpt, w9, b2)


# ------------------------------- module glue ---------------------------------

class Upsample:
    """JAX/Pallas port of the PyTorch Upsample module (nearest x2 + optional 3x3 conv)."""

    def __init__(self, channels, use_conv=False, out_channels=None, padding=1,
                 **kwargs):
        self.channels = channels
        self.out_channels = out_channels or channels
        self.use_conv = use_conv
        self.padding = padding
        if use_conv:
            # init_weights(): nn.init.zeros_ on conv weight and bias.
            self.conv_weight = jnp.zeros(
                (self.out_channels, self.channels, 3, 3), jnp.float32)
            self.conv_bias = jnp.zeros((self.out_channels,), jnp.float32)

    def __call__(self, x, target_size=None):
        assert x.shape[1] == self.channels
        if self.use_conv:
            return upsample_conv3x3(x, self.conv_weight, self.conv_bias,
                                    padding=self.padding, target_size=target_size)
        return nearest_upsample(x, target_size=target_size)


# --------------------------------- main ---------------------------------------

if __name__ == "__main__":
    key = jax.random.PRNGKey(0)
    B, C, H, W = 2, 4, 16, 16
    x = jax.random.normal(key, (B, C, H, W), jnp.float32)

    # Path 1: use_conv=False -> pure nearest x2 upsample (separable matmuls).
    m1 = Upsample(C, use_conv=False)
    y1 = jax.block_until_ready(m1(x))
    ref1 = jnp.repeat(jnp.repeat(x, 2, axis=2), 2, axis=3)
    assert y1.shape == (B, C, 2 * H, 2 * W)
    assert jnp.allclose(y1, ref1, atol=1e-6), "upsample mismatch"

    # Path 2: use_conv=True with zero-init conv (module spec) -> zeros.
    m2 = Upsample(C, use_conv=True, out_channels=C, padding=1)
    y2 = jax.block_until_ready(m2(x))
    assert y2.shape == (B, C, 2 * H, 2 * W)
    assert jnp.allclose(y2, jnp.zeros_like(y2)), "zero-init conv should give zeros"

    # Path 3: non-zero conv weights -> fused kernel vs pure-JAX reference.
    kw_key, kb_key = jax.random.split(jax.random.PRNGKey(1))
    m3 = Upsample(C, use_conv=True, out_channels=C, padding=1)
    m3.conv_weight = 0.1 * jax.random.normal(kw_key, (C, C, 3, 3), jnp.float32)
    m3.conv_bias = 0.1 * jax.random.normal(kb_key, (C,), jnp.float32)
    y3 = jax.block_until_ready(m3(x))
    up = jnp.repeat(jnp.repeat(x, 2, axis=2), 2, axis=3)
    ref3 = lax.conv_general_dilated(
        up, m3.conv_weight, window_strides=(1, 1), padding=((1, 1), (1, 1)),
        dimension_numbers=("NCHW", "OIHW", "NCHW")) + m3.conv_bias[None, :, None, None]
    assert y3.shape == ref3.shape
    assert jnp.allclose(y3, ref3, atol=1e-4, rtol=1e-4), "fused conv mismatch"

    # Path 4: explicit target_size (general nearest index map).
    y4 = jax.block_until_ready(m1(x, target_size=(24, 40)))
    hi = (jnp.arange(24) * H) // 24
    wi = (jnp.arange(40) * W) // 40
    ref4 = x[:, :, hi, :][:, :, :, wi]
    assert y4.shape == (B, C, 24, 40)
    assert jnp.allclose(y4, ref4, atol=1e-6), "target_size upsample mismatch"

    print("KERNEL_OK")
</pallas_src>

<mosaic_0001>
module attributes {stable_mosaic.version = 11 : i64} {
  func.func @_upsample_sep_kernel(%arg0: i32, %arg1: memref<1x4x16x16xf32, #tpu.memory_space<vmem>>, %arg2: memref<16x32xf32, #tpu.memory_space<vmem>>, %arg3: memref<32x16xf32, #tpu.memory_space<vmem>>, %arg4: memref<1x4x32x32xf32, #tpu.memory_space<vmem>>) attributes {dimension_semantics = [#tpu.dimension_semantics<parallel>], iteration_bounds = array<i64: 2>, scalar_prefetch = 0 : i64, scratch_operands = 0 : i64, tpu.core_type = #tpu.core_type<tc>, window_params = [{transform_indices = @transform_0, window_bounds = array<i64: 1, 4, 16, 16>}, {pipeline_mode = #tpu.pipeline_mode<synchronous>, transform_indices = @transform_1, window_bounds = array<i64: 16, 32>}, {pipeline_mode = #tpu.pipeline_mode<synchronous>, transform_indices = @transform_2, window_bounds = array<i64: 32, 16>}, {transform_indices = @transform_3, window_bounds = array<i64: 1, 4, 32, 32>}]} {
    %c0 = arith.constant 0 : index
    %c0_0 = arith.constant 0 : index
    %c0_1 = arith.constant 0 : index
    %c0_2 = arith.constant 0 : index
    %0 = vector.load %arg1[%c0, %c0_0, %c0_1, %c0_2] : memref<1x4x16x16xf32, #tpu.memory_space<vmem>>, vector<1x4x16x16xf32>
    %1 = vector.shape_cast %0 : vector<1x4x16x16xf32> to vector<4x16x16xf32>
    %2 = vector.shape_cast %1 : vector<4x16x16xf32> to vector<64x16xf32>
    %c0_3 = arith.constant 0 : index
    %c0_4 = arith.constant 0 : index
    %3 = vector.load %arg2[%c0_3, %c0_4] : memref<16x32xf32, #tpu.memory_space<vmem>>, vector<16x32xf32>
    %cst = arith.constant dense<0.000000e+00> : vector<64x32xf32>
    %4 = tpu.matmul %2, %3, %cst {dimension_numbers = #tpu.dot_dimension_numbers<[1], [0], [0], [1], [0, 0, 1, 1], [], []>} : vector<64x16xf32>, vector<16x32xf32>, vector<64x32xf32> -> vector<64x32xf32>
    %c0_5 = arith.constant 0 : index
    %c0_6 = arith.constant 0 : index
    %5 = vector.load %arg3[%c0_5, %c0_6] : memref<32x16xf32, #tpu.memory_space<vmem>>, vector<32x16xf32>
    %6 = vector.extract_strided_slice %4 {offsets = [0, 0], sizes = [16, 32], strides = [1, 1]} : vector<64x32xf32> to vector<16x32xf32>
    %cst_7 = arith.constant dense<0.000000e+00> : vector<32x32xf32>
    %7 = tpu.matmul %5, %6, %cst_7 {dimension_numbers = #tpu.dot_dimension_numbers<[1], [0], [0], [1], [0, 0, 1, 1], [], []>} : vector<32x16xf32>, vector<16x32xf32>, vector<32x32xf32> -> vector<32x32xf32>
    %c0_8 = arith.constant 0 : index
    %c0_9 = arith.constant 0 : index
    %c0_10 = arith.constant 0 : index
    %c0_11 = arith.constant 0 : index
    %8 = vector.load %arg4[%c0_8, %c0_9, %c0_10, %c0_11] : memref<1x4x32x32xf32, #tpu.memory_space<vmem>>, vector<1x1x32x32xf32>
    %9 = vector.shape_cast %8 : vector<1x1x32x32xf32> to vector<32x32xf32>
    %10 = vector.shape_cast %7 : vector<32x32xf32> to vector<1x1x32x32xf32>
    tpu.vector_store %arg4[%c0_8, %c0_9, %c0_10, %c0_11], %10 {strides = array<i32>} : memref<1x4x32x32xf32, #tpu.memory_space<vmem>>, vector<1x1x32x32xf32>,
    %11 = vector.extract_strided_slice %4 {offsets = [16, 0], sizes = [16, 32], strides = [1, 1]} : vector<64x32xf32> to vector<16x32xf32>
    %cst_12 = arith.constant dense<0.000000e+00> : vector<32x32xf32>
    %12 = tpu.matmul %5, %11, %cst_12 {dimension_numbers = #tpu.dot_dimension_numbers<[1], [0], [0], [1], [0, 0, 1, 1], [], []>} : vector<32x16xf32>, vector<16x32xf32>, vector<32x32xf32> -> vector<32x32xf32>
    %c0_13 = arith.constant 0 : index
    %c1 = arith.constant 1 : index
    %c0_14 = arith.constant 0 : index
    %c0_15 = arith.constant 0 : index
    %13 = vector.load %arg4[%c0_13, %c1, %c0_14, %c0_15] : memref<1x4x32x32xf32, #tpu.memory_space<vmem>>, vector<1x1x32x32xf32>
    %14 = vector.shape_cast %13 : vector<1x1x32x32xf32> to vector<32x32xf32>
    %15 = vector.shape_cast %12 : vector<32x32xf32> to vector<1x1x32x32xf32>
    tpu.vector_store %arg4[%c0_13, %c1, %c0_14, %c0_15], %15 {strides = array<i32>} : memref<1x4x32x32xf32, #tpu.memory_space<vmem>>, vector<1x1x32x32xf32>,
    %16 = vector.extract_strided_slice %4 {offsets = [32, 0], sizes = [16, 32], strides = [1, 1]} : vector<64x32xf32> to vector<16x32xf32>
    %cst_16 = arith.constant dense<0.000000e+00> : vector<32x32xf32>
    %17 = tpu.matmul %5, %16, %cst_16 {dimension_numbers = #tpu.dot_dimension_numbers<[1], [0], [0], [1], [0, 0, 1, 1], [], []>} : vector<32x16xf32>, vector<16x32xf32>, vector<32x32xf32> -> vector<32x32xf32>
    %c0_17 = arith.constant 0 : index
    %c2 = arith.constant 2 : index
    %c0_18 = arith.constant 0 : index
    %c0_19 = arith.constant 0 : index
    %18 = vector.load %arg4[%c0_17, %c2, %c0_18, %c0_19] : memref<1x4x32x32xf32, #tpu.memory_space<vmem>>, vector<1x1x32x32xf32>
    %19 = vector.shape_cast %18 : vector<1x1x32x32xf32> to vector<32x32xf32>
    %20 = vector.shape_cast %17 : vector<32x32xf32> to vector<1x1x32x32xf32>
    tpu.vector_store %arg4[%c0_17, %c2, %c0_18, %c0_19], %20 {strides = array<i32>} : memref<1x4x32x32xf32, #tpu.memory_space<vmem>>, vector<1x1x32x32xf32>,
    %21 = vector.extract_strided_slice %4 {offsets = [48, 0], sizes = [16, 32], strides = [1, 1]} : vector<64x32xf32> to vector<16x32xf32>
    %cst_20 = arith.constant dense<0.000000e+00> : vector<32x32xf32>
    %22 = tpu.matmul %5, %21, %cst_20 {dimension_numbers = #tpu.dot_dimension_numbers<[1], [0], [0], [1], [0, 0, 1, 1], [], []>} : vector<32x16xf32>, vector<16x32xf32>, vector<32x32xf32> -> vector<32x32xf32>
    %c0_21 = arith.constant 0 : index
    %c3 = arith.constant 3 : index
    %c0_22 = arith.constant 0 : index
    %c0_23 = arith.constant 0 : index
    %23 = vector.load %arg4[%c0_21, %c3, %c0_22, %c0_23] : memref<1x4x32x32xf32, #tpu.memory_space<vmem>>, vector<1x1x32x32xf32>
    %24 = vector.shape_cast %23 : vector<1x1x32x32xf32> to vector<32x32xf32>
    %25 = vector.shape_cast %22 : vector<32x32xf32> to vector<1x1x32x32xf32>
    tpu.vector_store %arg4[%c0_21, %c3, %c0_22, %c0_23], %25 {strides = array<i32>} : memref<1x4x32x32xf32, #tpu.memory_space<vmem>>, vector<1x1x32x32xf32>,
    return
  }
  func.func @transform_0(%arg0: i32) -> (i32, i32, i32, i32) {
    %c0_i32 = arith.constant 0 : i32
    %c0_i32_0 = arith.constant 0 : i32
    %c0_i32_1 = arith.constant 0 : i32
    %c0_i32_2 = arith.constant 0 : i32
    return %arg0, %c0_i32, %c0_i32_0, %c0_i32_1 : i32, i32, i32, i32
  }
  func.func @transform_1(%arg0: i32) -> (i32, i32) {
    %c0_i32 = arith.constant 0 : i32
    %c0_i32_0 = arith.constant 0 : i32
    %c0_i32_1 = arith.constant 0 : i32
    return %c0_i32, %c0_i32_0 : i32, i32
  }
  func.func @transform_2(%arg0: i32) -> (i32, i32) {
    %c0_i32 = arith.constant 0 : i32
    %c0_i32_0 = arith.constant 0 : i32
    %c0_i32_1 = arith.constant 0 : i32
    return %c0_i32, %c0_i32_0 : i32, i32
  }
  func.func @transform_3(%arg0: i32) -> (i32, i32, i32, i32) {
    %c0_i32 = arith.constant 0 : i32
    %c0_i32_0 = arith.constant 0 : i32
    %c0_i32_1 = arith.constant 0 : i32
    %c0_i32_2 = arith.constant 0 : i32
    return %arg0, %c0_i32, %c0_i32_0, %c0_i32_1 : i32, i32, i32, i32
  }
}

</mosaic_0001>

<llo_original>
// kernel: tpu_custom_call.1
$region0: #{tpu_custom_call.1}
  #allocation0 [shape = 'u32[]', space=smem, size = 0x4, offset = 0x4, fixed_abs, tag = 'smem constant byte address 0x4 - core index']
  #allocation1 [shape = 'u32[144,128]{1,0:T(1,128)}', space=vmem, size = 0x12000, scoped, tag = 'internal scratch']
  %s0 = inlined_call_operand.hbm [shape: f32[2,4,16,16], index: 0, kind: input, shape index: {}]
  %s1 = inlined_call_operand.hbm [shape: f32[16,32], index: 1, kind: input, shape index: {}]
  %s2 = inlined_call_operand.hbm [shape: f32[32,16], index: 2, kind: input, shape index: {}]
  %s3 = inlined_call_operand.hbm [shape: f32[2,4,32,32], index: 3, kind: output, shape index: {}]
  %s4 = sld [smem:[#allocation0]]
  $region57: #{tpu_custom_call.1} parent=0
    _
  %s6 = ssub.s32 1, %s4
  %s7 = scalar_select 0, %s6, %s4
  $region1: #{tpu_custom_call.1} parent=0
    #allocation2 [shape = 'u8[65536]{0}', space=vmem, size = 0x10000, scoped, tag = 'input window, operand 0']
    #allocation3 [shape = 's32[2]{0}', space=sflag, size = 0x8, scoped, tag = 'scoped memory for tpu_custom_call.1']
    #allocation4 [shape = 's32[2]{0}', space=sflag, size = 0x8, scoped, tag = 'scoped memory for tpu_custom_call.1']
    #allocation5 [shape = 'u8[8192]{0}', space=vmem, size = 0x2000, scoped, tag = 'input window, operand 1, single buffered']
    #allocation6 [shape = 's32[1]{0}', space=sflag, size = 0x4, scoped, tag = 'scoped memory for tpu_custom_call.1']
    #allocation7 [shape = 'u8[16384]{0}', space=vmem, size = 0x4000, scoped, tag = 'input window, operand 2, single buffered']
    #allocation8 [shape = 'u8[131072]{0}', space=vmem, size = 0x20000, scoped, tag = 'output window, operand 0']
    %8 = vsyncpa [#allocation3], 0
    %s9 = scalar_lea.sflag [#allocation3], 1
    %10 = vsyncpa %s9, 0
    %11 = vsyncpa [#allocation6], 0
    %12 = vsyncpa [#allocation4], 0
    %s13 = scalar_lea.sflag [#allocation4], 1
    %14 = vsyncpa %s13, 0
    loop: start=0, step=1, limit=4
    $region2: #{tpu_custom_call.1} parent=1 // loop_pre_header
      _
    $region3: #{tpu_custom_call.1} parent=1 // loop_header
      %s16 = sphi 0, %s20
      %p17 = scmp.ge.s32.totalorder %s16, 4
      %s26 = sphi 0, %s28
      %s29 = sphi 0, %s26
      %s30 = sphi 0, %s29
      %s46 = sphi 0, %s30
      %s50 = sphi 0, %s50
      %s52 = sphi 0, %s50
      %s53 = sphi 0, %s52
      %s67 = sphi 0, %s53
      %s71 = sphi 0, %s71
      %s73 = sphi 0, %s71
      %s74 = sphi 0, %s73
      %s88 = sphi 0, %s74
      %s94 = sphi 0, %s96
      %s97 = sphi 0, %s94
      %s98 = sphi 0, %s97
      %s114 = sphi 0, %s98
    $region4: #{tpu_custom_call.1} parent=1 // loop_header_branch
      %19 = sbr.rel (%p17) target = $region8
    $region5: #{tpu_custom_call.1} parent=1 // loop_body
      %s21 = ssub.s32 %s16, 1
      %s22 = ssub.s32 %s16, 2
      %s23 = sadd.s32 %s16, 1
      %s24 = ssub.s32 %s16, %s23
      %p25 = scmp.eq.s32.totalorder %s24, 0
      %s27 = sadd.s32 %s26, 1
      %s28 = scalar_select %p25, %s26, %s27
      %p31 = pneg %p25
      %p32 = scmp.eq.s32.totalorder %s16, 1
      %p33 = por %p31, %p32
      %p34 = scmp.ne.s32.totalorder %s26, %s29
      %p35 = scmp.eq.s32.totalorder %s16, 0
      %p36 = por %p34, %p35
      %p37 = scmp.ne.s32.totalorder %s26, %s29
      %p38 = scmp.eq.s32.totalorder %s21, 1
      %p39 = por %p37, %p38
      %p40 = scmp.ne.s32.totalorder %s29, %s30
      %p41 = scmp.eq.s32.totalorder %s21, 0
      %p42 = por %p40, %p41
      %p43 = scmp.ne.s32.totalorder %s29, %s30
      %p44 = scmp.eq.s32.totalorder %s22, 1
      %p45 = por %p43, %p44
      %p47 = scmp.ne.s32.totalorder %s30, %s46
      %p48 = scmp.eq.s32.totalorder %s22, 0
      %p49 = por %p47, %p48
      %s51 = sadd.s32 %s50, 1
      %p54 = scmp.eq.s32.totalorder %s16, 1
      %p55 = scmp.ne.s32.totalorder %s50, %s52
      %p56 = scmp.eq.s32.totalorder %s16, 0
      %p57 = por %p55, %p56
      %p58 = scmp.ne.s32.totalorder %s50, %s52
      %p59 = scmp.eq.s32.totalorder %s21, 1
      %p60 = por %p58, %p59
      %p61 = scmp.ne.s32.totalorder %s52, %s53
      %p62 = scmp.eq.s32.totalorder %s21, 0
      %p63 = por %p61, %p62
      %p64 = scmp.ne.s32.totalorder %s52, %s53
      %p65 = scmp.eq.s32.totalorder %s22, 1
      %p66 = por %p64, %p65
      %p68 = scmp.ne.s32.totalorder %s53, %s67
      %p69 = scmp.eq.s32.totalorder %s22, 0
      %p70 = por %p68, %p69
      %s72 = sadd.s32 %s71, 1
      %p75 = scmp.eq.s32.totalorder %s16, 1
      %p76 = scmp.ne.s32.totalorder %s71, %s73
      %p77 = scmp.eq.s32.totalorder %s16, 0
      %p78 = por %p76, %p77
      %p79 = scmp.ne.s32.totalorder %s71, %s73
      %p80 = scmp.eq.s32.totalorder %s21, 1
      %p81 = por %p79, %p80
      %p82 = scmp.ne.s32.totalorder %s73, %s74
      %p83 = scmp.eq.s32.totalorder %s21, 0
      %p84 = por %p82, %p83
      %p85 = scmp.ne.s32.totalorder %s73, %s74
      %p86 = scmp.eq.s32.totalorder %s22, 1
      %p87 = por %p85, %p86
      %p89 = scmp.ne.s32.totalorder %s74, %s88
      %p90 = scmp.eq.s32.totalorder %s22, 0
      %p91 = por %p89, %p90
      %s92 = ssub.s32 %s16, %s23
      %p93 = scmp.eq.s32.totalorder %s92, 0
      %s95 = sadd.s32 %s94, 1
      %s96 = scalar_select %p93, %s94, %s95
      %p99 = pneg %p93
      %p100 = scmp.eq.s32.totalorder %s16, 1
      %p101 = por %p99, %p100
      %p102 = scmp.ne.s32.totalorder %s94, %s97
      %p103 = scmp.eq.s32.totalorder %s16, 0
      %p104 = por %p102, %p103
      %p105 = scmp.ne.s32.totalorder %s94, %s97
      %p106 = scmp.eq.s32.totalorder %s21, 1
      %p107 = por %p105, %p106
      %p108 = scmp.ne.s32.totalorder %s97, %s98
      %p109 = scmp.eq.s32.totalorder %s21, 0
      %p110 = por %p108, %p109
      %p111 = scmp.ne.s32.totalorder %s97, %s98
      %p112 = scmp.eq.s32.totalorder %s22, 1
      %p113 = por %p111, %p112
      %p115 = scmp.ne.s32.totalorder %s98, %s114
      %p116 = scmp.eq.s32.totalorder %s22, 0
      %p117 = por %p115, %p116
      %p118 = scmp.le.s32.totalorder 1, %s16
      %p119 = scmp.lt.s32.totalorder %s16, 3
      %p120 = pnand %p118, %p119
      %p121 = pneg %p120
      // Predicated region
      $region9: #{tpu_custom_call.1} parent=5 // pred_check
        _
      $region10: #{tpu_custom_call.1} parent=5 // pred_check_branch
        %123 = sbr.rel (%p120) target = $region12
      $region11: #{tpu_custom_call.1} parent=5 // pred_region
        %s124 = ssub.s32 %s16, 1
        // Predicated region
        $region13: #{tpu_custom_call.1} parent=11 // pred_check
          %p125 = pneg %p63
        $region14: #{tpu_custom_call.1} parent=11 // pred_check_branch
          %127 = sbr.rel (%p125) target = $region16
        $region15: #{tpu_custom_call.1} parent=11 // pred_region
          %s129 = ssub.s32 256, 256
          %130 = vsyncadd [#allocation6], %s129
          %s131 = sshll.u32 [#allocation5], 4
          %s132 = int_to_ptr.vmem [resolvable:$true] %s131
          %137 = dma.hbm_to_vmem [thread:$0]  %s1, 256, %s132, [#allocation6], 128, 128, 8
        $region16: #{tpu_custom_call.1} parent=11 // pred_fallthru
          _
        // Predicated region
        $region17: #{tpu_custom_call.1} parent=11 // pred_check
          %p138 = pneg %p84
        $region18: #{tpu_custom_call.1} parent=11 // pred_check_branch
          %140 = sbr.rel (%p138) target = $region20
        $region19: #{tpu_custom_call.1} parent=11 // pred_region
          %s142 = ssub.s32 512, 512
          %143 = vsyncadd [#allocation6], %s142
          %s144 = sshll.u32 [#allocation7], 4
          %s145 = int_to_ptr.vmem [resolvable:$true] %s144
          %150 = dma.hbm_to_vmem [thread:$0]  %s2, 512, %s145, [#allocation6], 128, 128, 8
        $region20: #{tpu_custom_call.1} parent=11 // pred_fallthru
          _
      $region12: #{tpu_custom_call.1} parent=5 // pred_fallthru
        _
      %p151 = scmp.lt.s32.totalorder %s16, 2
      // Predicated region
      $region21: #{tpu_custom_call.1} parent=5 // pred_check
        %p152 = pneg %p151
      $region22: #{tpu_custom_call.1} parent=5 // pred_check_branch
        %154 = sbr.rel (%p152) target = $region24
      $region23: #{tpu_custom_call.1} parent=5 // pred_region
        // Predicated region
        $region25: #{tpu_custom_call.1} parent=23 // pred_check
          %p155 = pneg %p36
        $region26: #{tpu_custom_call.1} parent=23 // pred_check_branch
          %157 = sbr.rel (%p155) target = $region28
        $region27: #{tpu_custom_call.1} parent=23 // pred_region
          %s158 = sand.u32 %s26, 1
          %s159 = scalar_lea.sflag [#allocation3], %s158
          %s160 = sand.u32 %s26, 1
          %s161 = smul.addr %s160, 64
          %s162 = scalar_lea.vmem [#allocation2], %s161
          %s164 = ssub.s32 1024, 1024
          %165 = vsyncadd %s159, %s164
          %s166 = smul.addr %s16, 8
          %s167 = smul.addr %s166, 128
          %s168 = scalar_lea.hbm %s0, %s167
          %s169 = sshll.u32 %s162, 4
          %s170 = int_to_ptr.vmem [resolvable:$true] %s169
          %175 = dma.hbm_to_vmem [thread:$0]  %s168, 1024, %s170, %s159, 128, 128, 8
        $region28: #{tpu_custom_call.1} parent=23 // pred_fallthru
          _
      $region24: #{tpu_custom_call.1} parent=5 // pred_fallthru
        _
      %p176 = scmp.le.s32.totalorder 1, %s16
      %p177 = scmp.lt.s32.totalorder %s16, 3
      %p178 = pnand %p176, %p177
      %p179 = pneg %p178
      // Predicated region
      $region29: #{tpu_custom_call.1} parent=5 // pred_check
        _
      $region30: #{tpu_custom_call.1} parent=5 // pred_check_branch
        %181 = sbr.rel (%p178) target = $region32
      $region31: #{tpu_custom_call.1} parent=5 // pred_region
        %s182 = ssub.s32 %s16, 1
        %s183 = sand.u32 %s29, 1
        %s184 = scalar_lea.sflag [#allocation3], %s183
        %s185 = sand.u32 %s29, 1
        %s186 = smul.addr %s185, 64
        %s187 = scalar_lea.vmem [#allocation2], %s186
        // Predicated region
        $region33: #{tpu_custom_call.1} parent=31 // pred_check
          %p188 = pneg %p42
        $region34: #{tpu_custom_call.1} parent=31 // pred_check_branch
          %190 = sbr.rel (%p188) target = $region36
        $region35: #{tpu_custom_call.1} parent=31 // pred_region
          %191 = dma.done %s184, 1024
        $region36: #{tpu_custom_call.1} parent=31 // pred_fallthru
          _
        // Predicated region
        $region37: #{tpu_custom_call.1} parent=31 // pred_check
          %p192 = pneg %p63
        $region38: #{tpu_custom_call.1} parent=31 // pred_check_branch
          %194 = sbr.rel (%p192) target = $region40
        $region39: #{tpu_custom_call.1} parent=31 // pred_region
          %195 = dma.done [#allocation6], 256
        $region40: #{tpu_custom_call.1} parent=31 // pred_fallthru
          _
        // Predicated region
        $region41: #{tpu_custom_call.1} parent=31 // pred_check
          %p196 = pneg %p84
        $region42: #{tpu_custom_call.1} parent=31 // pred_check_branch
          %198 = sbr.rel (%p196) target = $region44
        $region43: #{tpu_custom_call.1} parent=31 // pred_region
          %199 = dma.done [#allocation6], 512
        $region44: #{tpu_custom_call.1} parent=31 // pred_fallthru
          _
        %s200 = sand.u32 %s29, 1
        %s201 = scalar_lea.sflag [#allocation3], %s200
        %s202 = sand.u32 %s29, 1
        %s203 = smul.addr %s202, 64
        %s204 = scalar_lea.vmem [#allocation2], %s203
        %p205 = pneg %p42
        %p206 = pneg %p39
        %p207 = pneg %p63
        %p208 = pneg %p60
        %p209 = pneg %p84
        %p210 = pneg %p81
        %p211 = pneg %p110
        %p212 = pneg %p107
        %s213 = sand.u32 %s97, 1
        %s214 = scalar_lea.sflag [#allocation4], %s213
        %s215 = sand.u32 %s97, 1
        %s216 = smul.addr %s215, 128
        %s217 = scalar_lea.vmem [#allocation8], %s216
        %v218 = vld [vmem:[%s187] sm:$0xff]
        %v219 = vld [vmem:[%s187 + $0x8] sm:$0xff]
        %v220 = vld [vmem:[%s187 + $0x10] sm:$0xff]
        %v221 = vld [vmem:[%s187 + $0x18] sm:$0xff]
        %v222 = vld [vmem:[%s187 + $0x20] sm:$0xff]
        %v223 = vld [vmem:[%s187 + $0x28] sm:$0xff]
        %v224 = vld [vmem:[%s187 + $0x30] sm:$0xff]
        %v225 = vld [vmem:[%s187 + $0x38] sm:$0xff]
        %v226 = vld [vmem:[#allocation5] sm:$0xff]
        %v227 = vld [vmem:[#allocation5 + $0x8] sm:$0xff]
        %vm228 = vcmask 130048
        %v230 = vsel %vm228, %v218, 0
        %v233 = vsel %vm228, %v219, 0
        %v236 = vsel %vm228, %v220, 0
        %v239 = vsel %vm228, %v221, 0
        %v242 = vsel %vm228, %v222, 0
        %v245 = vsel %vm228, %v223, 0
        %v248 = vsel %vm228, %v224, 0
        %v251 = vsel %vm228, %v225, 0
        %253 = vmatprep.subr.mxu0 0.0
        %254 = vmatpush1.msra.mxu0 %v226
        %255 = vmatprep.subr.mxu0 0.0
        %256 = vmatpush1.msra.mxu0 %v227
        %257 = vmatprep.subr.mxu0 0.0
        %258 = vmatpush1.msra.mxu0 0.0
        %259 = vmatprep.subr.mxu0 0.0
        %260 = vmatpush1.msra.mxu0 0.0
        %261 = vmatprep.subr.mxu0 0.0
        %262 = vmatpush1.msra.mxu0 0.0
        %263 = vmatprep.subr.mxu0 0.0
        %264 = vmatpush1.msra.mxu0 0.0
        %265 = vmatprep.subr.mxu0 0.0
        %266 = vmatpush1.msra.mxu0 0.0
        %267 = vmatprep.subr.mxu0 0.0
        %268 = vmatpush1.msra.mxu0 0.0
        %269 = vmatprep.subr.mxu0 0.0
        %270 = vmatpush1.msra.mxu0 0.0
        %271 = vmatprep.subr.mxu0 0.0
        %272 = vmatpush1.msra.mxu0 0.0
        %273 = vmatprep.subr.mxu0 0.0
        %274 = vmatpush1.msra.mxu0 0.0
        %275 = vmatprep.subr.mxu0 0.0
        %276 = vmatpush1.msra.mxu0 0.0
        %277 = vmatprep.subr.mxu0 0.0
        %278 = vmatpush1.msra.mxu0 0.0
        %279 = vmatprep.subr.mxu0 0.0
        %280 = vmatpush1.msra.mxu0 0.0
        %281 = vmatprep.subr.mxu0 0.0
        %282 = vmatpush1.msra.mxu0 0.0
        %283 = vmatprep.subr.mxu0 0.0
        %284 = vmatpush1.msra.mxu0 0.0
        %285 = vmatprep.subr.mxu0 0.0
        %286 = vmatpush1.msra.mxu0 0.0
        %287 = vmatprep.subr.mxu0 0.0
        %288 = vmatpush1.msra.mxu0 0.0
        %289 = vmatprep.subr.mxu0 0.0
        %290 = vmatpush1.msra.mxu0 0.0
        %291 = vmatprep.subr.mxu0 0.0
        %292 = vmatpush1.msra.mxu0 0.0
        %293 = vmatprep.subr.mxu0 0.0
        %294 = vmatpush1.msra.mxu0 0.0
        %295 = vmatprep.subr.mxu0 0.0
        %296 = vmatpush1.msra.mxu0 0.0
        %297 = vmatprep.subr.mxu0 0.0
        %298 = vmatpush1.msra.mxu0 0.0
        %299 = vmatprep.subr.mxu0 0.0
        %300 = vmatpush1.msra.mxu0 0.0
        %301 = vmatprep.subr.mxu0 0.0
        %302 = vmatpush1.msra.mxu0 0.0
        %303 = vmatprep.subr.mxu0 0.0
        %304 = vmatpush1.msra.mxu0 0.0
        %305 = vmatprep.subr.mxu0 0.0
        %306 = vmatpush1.msra.mxu0 0.0
        %307 = vmatprep.subr.mxu0 0.0
        %308 = vmatpush1.msra.mxu0 0.0
        %309 = vmatprep.subr.mxu0 0.0
        %310 = vmatpush1.msra.mxu0 0.0
        %311 = vmatprep.subr.mxu0 0.0
        %312 = vmatpush1.msra.mxu0 0.0
        %313 = vmatprep.subr.mxu0 0.0
        %314 = vmatpush1.msra.mxu0 0.0
        %315 = vmatprep.subr.mxu0 0.0
        %316 = vmatpush1.msra.mxu0 0.0
        %317 = vmatprep.mubr.f32.mxu0 0.0
        %318 = vmatmul.mubr.f32.gmra.mrb[0].mxu0 %v230
        %v319 = vpop.f32.mrb[0].mxu0
        %v320 = vadd.f32 0.0, %v319
        %v321 = vpop.f32.mrb[0].mxu0
        %322 = vmatprep.mubr.f32.mxu0 0.0
        %323 = vmatmul.mubr.f32.gmra.mrb[0].mxu0 %v233
        %v324 = vpop.f32.mrb[0].mxu0
        %v325 = vadd.f32 0.0, %v324
        %v326 = vpop.f32.mrb[0].mxu0
        %327 = vmatprep.mubr.f32.mxu0 0.0
        %328 = vmatmul.mubr.f32.gmra.mrb[0].mxu0 %v236
        %v329 = vpop.f32.mrb[0].mxu0
        %v330 = vadd.f32 0.0, %v329
        %v331 = vpop.f32.mrb[0].mxu0
        %332 = vmatprep.mubr.f32.mxu0 0.0
        %333 = vmatmul.mubr.f32.gmra.mrb[0].mxu0 %v239
        %v334 = vpop.f32.mrb[0].mxu0
        %v335 = vadd.f32 0.0, %v334
        %v336 = vpop.f32.mrb[0].mxu0
        %337 = vmatprep.mubr.f32.mxu0 0.0
        %338 = vmatmul.mubr.f32.gmra.mrb[0].mxu0 %v242
        %v339 = vpop.f32.mrb[0].mxu0
        %v340 = vadd.f32 0.0, %v339
        %v341 = vpop.f32.mrb[0].mxu0
        %342 = vmatprep.mubr.f32.mxu0 0.0
        %343 = vmatmul.mubr.f32.gmra.mrb[0].mxu0 %v245
        %v344 = vpop.f32.mrb[0].mxu0
        %v345 = vadd.f32 0.0, %v344
        %v346 = vpop.f32.mrb[0].mxu0
        %347 = vmatprep.mubr.f32.mxu0 0.0
        %348 = vmatmul.mubr.f32.gmra.mrb[0].mxu0 %v248
        %v349 = vpop.f32.mrb[0].mxu0
        %v350 = vadd.f32 0.0, %v349
        %v351 = vpop.f32.mrb[0].mxu0
        %352 = vmatprep.mubr.f32.mxu0 0.0
        %353 = vmatmul.mubr.f32.gmra.mrb[0].mxu0 %v251
        %v354 = vpop.f32.mrb[0].mxu0
        %v355 = vadd.f32 0.0, %v354
        %v356 = vpop.f32.mrb[0].mxu0
        %357 = vdwg.mxu0
        %v358 = vld [vmem:[#allocation7] sm:$0xff]
        %v359 = vld [vmem:[#allocation7 + $0x8] sm:$0xff]
        %v360 = vld [vmem:[#allocation7 + $0x10] sm:$0xff]
        %v361 = vld [vmem:[#allocation7 + $0x18] sm:$0xff]
        %v363 = vsel %vm228, %v358, 0
        %v366 = vsel %vm228, %v359, 0
        %v369 = vsel %vm228, %v360, 0
        %v372 = vsel %vm228, %v361, 0
        %374 = vmatprep.subr.mxu0 0.0
        %375 = vmatpush1.msra.mxu0 %v320
        %376 = vmatprep.subr.mxu0 0.0
        %377 = vmatpush1.msra.mxu0 %v325
        %378 = vmatprep.subr.mxu0 0.0
        %379 = vmatpush1.msra.mxu0 0.0
        %380 = vmatprep.subr.mxu0 0.0
        %381 = vmatpush1.msra.mxu0 0.0
        %382 = vmatprep.subr.mxu0 0.0
        %383 = vmatpush1.msra.mxu0 0.0
        %384 = vmatprep.subr.mxu0 0.0
        %385 = vmatpush1.msra.mxu0 0.0
        %386 = vmatprep.subr.mxu0 0.0
        %387 = vmatpush1.msra.mxu0 0.0
        %388 = vmatprep.subr.mxu0 0.0
        %389 = vmatpush1.msra.mxu0 0.0
        %390 = vmatprep.subr.mxu0 0.0
        %391 = vmatpush1.msra.mxu0 0.0
        %392 = vmatprep.subr.mxu0 0.0
        %393 = vmatpush1.msra.mxu0 0.0
        %394 = vmatprep.subr.mxu0 0.0
        %395 = vmatpush1.msra.mxu0 0.0
        %396 = vmatprep.subr.mxu0 0.0
        %397 = vmatpush1.msra.mxu0 0.0
        %398 = vmatprep.subr.mxu0 0.0
        %399 = vmatpush1.msra.mxu0 0.0
        %400 = vmatprep.subr.mxu0 0.0
        %401 = vmatpush1.msra.mxu0 0.0
        %402 = vmatprep.subr.mxu0 0.0
        %403 = vmatpush1.msra.mxu0 0.0
        %404 = vmatprep.subr.mxu0 0.0
        %405 = vmatpush1.msra.mxu0 0.0
        %406 = vmatprep.subr.mxu0 0.0
        %407 = vmatpush1.msra.mxu0 0.0
        %408 = vmatprep.subr.mxu0 0.0
        %409 = vmatpush1.msra.mxu0 0.0
        %410 = vmatprep.subr.mxu0 0.0
        %411 = vmatpush1.msra.mxu0 0.0
        %412 = vmatprep.subr.mxu0 0.0
        %413 = vmatpush1.msra.mxu0 0.0
        %414 = vmatprep.subr.mxu0 0.0
        %415 = vmatpush1.msra.mxu0 0.0
        %416 = vmatprep.subr.mxu0 0.0
        %417 = vmatpush1.msra.mxu0 0.0
        %418 = vmatprep.subr.mxu0 0.0
        %419 = vmatpush1.msra.mxu0 0.0
        %420 = vmatprep.subr.mxu0 0.0
        %421 = vmatpush1.msra.mxu0 0.0
        %422 = vmatprep.subr.mxu0 0.0
        %423 = vmatpush1.msra.mxu0 0.0
        %424 = vmatprep.subr.mxu0 0.0
        %425 = vmatpush1.msra.mxu0 0.0
        %426 = vmatprep.subr.mxu0 0.0
        %427 = vmatpush1.msra.mxu0 0.0
        %428 = vmatprep.subr.mxu0 0.0
        %429 = vmatpush1.msra.mxu0 0.0
        %430 = vmatprep.subr.mxu0 0.0
        %431 = vmatpush1.msra.mxu0 0.0
        %432 = vmatprep.subr.mxu0 0.0
        %433 = vmatpush1.msra.mxu0 0.0
        %434 = vmatprep.subr.mxu0 0.0
        %435 = vmatpush1.msra.mxu0 0.0
        %436 = vmatprep.subr.mxu0 0.0
        %437 = vmatpush1.msra.mxu0 0.0
        %438 = vmatprep.mubr.f32.mxu0 0.0
        %439 = vmatmul.mubr.f32.gmra.mrb[0].mxu0 %v363
        %v440 = vpop.f32.mrb[0].mxu0
        %v441 = vadd.f32 0.0, %v440
        %v442 = vpop.f32.mrb[0].mxu0
        %443 = vmatprep.mubr.f32.mxu0 0.0
        %444 = vmatmul.mubr.f32.gmra.mrb[0].mxu0 %v366
        %v445 = vpop.f32.mrb[0].mxu0
        %v446 = vadd.f32 0.0, %v445
        %v447 = vpop.f32.mrb[0].mxu0
        %448 = vmatprep.mubr.f32.mxu0 0.0
        %449 = vmatmul.mubr.f32.gmra.mrb[0].mxu0 %v369
        %v450 = vpop.f32.mrb[0].mxu0
        %v451 = vadd.f32 0.0, %v450
        %v452 = vpop.f32.mrb[0].mxu0
        %453 = vmatprep.mubr.f32.mxu0 0.0
        %454 = vmatmul.mubr.f32.gmra.mrb[0].mxu0 %v372
        %v455 = vpop.f32.mrb[0].mxu0
        %v456 = vadd.f32 0.0, %v455
        %v457 = vpop.f32.mrb[0].mxu0
        %458 = vdwg.mxu0
        %vm459 = vcmask 261120
        %460 = vst.msk [vmem:[%s217] sm:$0xff] %vm459, %v441
        %461 = vst.msk [vmem:[%s217 + $0x8] sm:$0xff] %vm459, %v446
        %462 = vst.msk [vmem:[%s217 + $0x10] sm:$0xff] %vm459, %v451
        %463 = vst.msk [vmem:[%s217 + $0x18] sm:$0xff] %vm459, %v456
        %464 = vmatprep.subr.mxu0 0.0
        %465 = vmatpush1.msra.mxu0 %v330
        %466 = vmatprep.subr.mxu0 0.0
        %467 = vmatpush1.msra.mxu0 %v335
        %468 = vmatprep.subr.mxu0 0.0
        %469 = vmatpush1.msra.mxu0 0.0
        %470 = vmatprep.subr.mxu0 0.0
        %471 = vmatpush1.msra.mxu0 0.0
        %472 = vmatprep.subr.mxu0 0.0
        %473 = vmatpush1.msra.mxu0 0.0
        %474 = vmatprep.subr.mxu0 0.0
        %475 = vmatpush1.msra.mxu0 0.0
        %476 = vmatprep.subr.mxu0 0.0
        %477 = vmatpush1.msra.mxu0 0.0
        %478 = vmatprep.subr.mxu0 0.0
        %479 = vmatpush1.msra.mxu0 0.0
        %480 = vmatprep.subr.mxu0 0.0
        %481 = vmatpush1.msra.mxu0 0.0
        %482 = vmatprep.subr.mxu0 0.0
        %483 = vmatpush1.msra.mxu0 0.0
        %484 = vmatprep.subr.mxu0 0.0
        %485 = vmatpush1.msra.mxu0 0.0
        %486 = vmatprep.subr.mxu0 0.0
        %487 = vmatpush1.msra.mxu0 0.0
        %488 = vmatprep.subr.mxu0 0.0
        %489 = vmatpush1.msra.mxu0 0.0
        %490 = vmatprep.subr.mxu0 0.0
        %491 = vmatpush1.msra.mxu0 0.0
        %492 = vmatprep.subr.mxu0 0.0
        %493 = vmatpush1.msra.mxu0 0.0
        %494 = vmatprep.subr.mxu0 0.0
        %495 = vmatpush1.msra.mxu0 0.0
        %496 = vmatprep.subr.mxu0 0.0
        %497 = vmatpush1.msra.mxu0 0.0
        %498 = vmatprep.subr.mxu0 0.0
        %499 = vmatpush1.msra.mxu0 0.0
        %500 = vmatprep.subr.mxu0 0.0
        %501 = vmatpush1.msra.mxu0 0.0
        %502 = vmatprep.subr.mxu0 0.0
        %503 = vmatpush1.msra.mxu0 0.0
        %504 = vmatprep.subr.mxu0 0.0
        %505 = vmatpush1.msra.mxu0 0.0
        %506 = vmatprep.subr.mxu0 0.0
        %507 = vmatpush1.msra.mxu0 0.0
        %508 = vmatprep.subr.mxu0 0.0
        %509 = vmatpush1.msra.mxu0 0.0
        %510 = vmatprep.subr.mxu0 0.0
        %511 = vmatpush1.msra.mxu0 0.0
        %512 = vmatprep.subr.mxu0 0.0
        %513 = vmatpush1.msra.mxu0 0.0
        %514 = vmatprep.subr.mxu0 0.0
        %515 = vmatpush1.msra.mxu0 0.0
        %516 = vmatprep.subr.mxu0 0.0
        %517 = vmatpush1.msra.mxu0 0.0
        %518 = vmatprep.subr.mxu0 0.0
        %519 = vmatpush1.msra.mxu0 0.0
        %520 = vmatprep.subr.mxu0 0.0
        %521 = vmatpush1.msra.mxu0 0.0
        %522 = vmatprep.subr.mxu0 0.0
        %523 = vmatpush1.msra.mxu0 0.0
        %524 = vmatprep.subr.mxu0 0.0
        %525 = vmatpush1.msra.mxu0 0.0
        %526 = vmatprep.subr.mxu0 0.0
        %527 = vmatpush1.msra.mxu0 0.0
        %528 = vmatprep.mubr.f32.mxu0 0.0
        %529 = vmatmul.mubr.f32.gmra.mrb[0].mxu0 %v363
        %v530 = vpop.f32.mrb[0].mxu0
        %v531 = vadd.f32 0.0, %v530
        %v532 = vpop.f32.mrb[0].mxu0
        %533 = vmatprep.mubr.f32.mxu0 0.0
        %534 = vmatmul.mubr.f32.gmra.mrb[0].mxu0 %v366
        %v535 = vpop.f32.mrb[0].mxu0
        %v536 = vadd.f32 0.0, %v535
        %v537 = vpop.f32.mrb[0].mxu0
        %538 = vmatprep.mubr.f32.mxu0 0.0
        %539 = vmatmul.mubr.f32.gmra.mrb[0].mxu0 %v369
        %v540 = vpop.f32.mrb[0].mxu0
        %v541 = vadd.f32 0.0, %v540
        %v542 = vpop.f32.mrb[0].mxu0
        %543 = vmatprep.mubr.f32.mxu0 0.0
        %544 = vmatmul.mubr.f32.gmra.mrb[0].mxu0 %v372
        %v545 = vpop.f32.mrb[0].mxu0
        %v546 = vadd.f32 0.0, %v545
        %v547 = vpop.f32.mrb[0].mxu0
        %548 = vdwg.mxu0
        %s549 = scalar_lea.vmem %s217, 32 [#allocation8]
        %550 = vst.msk [vmem:[%s549] sm:$0xff] %vm459, %v531
        %551 = vst.msk [vmem:[%s549 + $0x8] sm:$0xff] %vm459, %v536
        %552 = vst.msk [vmem:[%s549 + $0x10] sm:$0xff] %vm459, %v541
        %553 = vst.msk [vmem:[%s549 + $0x18] sm:$0xff] %vm459, %v546
        %554 = vmatprep.subr.mxu0 0.0
        %555 = vmatpush1.msra.mxu0 %v340
        %556 = vmatprep.subr.mxu0 0.0
        %557 = vmatpush1.msra.mxu0 %v345
        %558 = vmatprep.subr.mxu0 0.0
        %559 = vmatpush1.msra.mxu0 0.0
        %560 = vmatprep.subr.mxu0 0.0
        %561 = vmatpush1.msra.mxu0 0.0
        %562 = vmatprep.subr.mxu0 0.0
        %563 = vmatpush1.msra.mxu0 0.0
        %564 = vmatprep.subr.mxu0 0.0
        %565 = vmatpush1.msra.mxu0 0.0
        %566 = vmatprep.subr.mxu0 0.0
        %567 = vmatpush1.msra.mxu0 0.0
        %568 = vmatprep.subr.mxu0 0.0
        %569 = vmatpush1.msra.mxu0 0.0
        %570 = vmatprep.subr.mxu0 0.0
        %571 = vmatpush1.msra.mxu0 0.0
        %572 = vmatprep.subr.mxu0 0.0
        %573 = vmatpush1.msra.mxu0 0.0
        %574 = vmatprep.subr.mxu0 0.0
        %575 = vmatpush1.msra.mxu0 0.0
        %576 = vmatprep.subr.mxu0 0.0
        %577 = vmatpush1.msra.mxu0 0.0
        %578 = vmatprep.subr.mxu0 0.0
        %579 = vmatpush1.msra.mxu0 0.0
        %580 = vmatprep.subr.mxu0 0.0
        %581 = vmatpush1.msra.mxu0 0.0
        %582 = vmatprep.subr.mxu0 0.0
        %583 = vmatpush1.msra.mxu0 0.0
        %584 = vmatprep.subr.mxu0 0.0
        %585 = vmatpush1.msra.mxu0 0.0
        %586 = vmatprep.subr.mxu0 0.0
        %587 = vmatpush1.msra.mxu0 0.0
        %588 = vmatprep.subr.mxu0 0.0
        %589 = vmatpush1.msra.mxu0 0.0
        %590 = vmatprep.subr.mxu0 0.0
        %591 = vmatpush1.msra.mxu0 0.0
        %592 = vmatprep.subr.mxu0 0.0
        %593 = vmatpush1.msra.mxu0 0.0
        %594 = vmatprep.subr.mxu0 0.0
        %595 = vmatpush1.msra.mxu0 0.0
        %596 = vmatprep.subr.mxu0 0.0
        %597 = vmatpush1.msra.mxu0 0.0
        %598 = vmatprep.subr.mxu0 0.0
        %599 = vmatpush1.msra.mxu0 0.0
        %600 = vmatprep.subr.mxu0 0.0
        %601 = vmatpush1.msra.mxu0 0.0
        %602 = vmatprep.subr.mxu0 0.0
        %603 = vmatpush1.msra.mxu0 0.0
        %604 = vmatprep.subr.mxu0 0.0
        %605 = vmatpush1.msra.mxu0 0.0
        %606 = vmatprep.subr.mxu0 0.0
        %607 = vmatpush1.msra.mxu0 0.0
        %608 = vmatprep.subr.mxu0 0.0
        %609 = vmatpush1.msra.mxu0 0.0
        %610 = vmatprep.subr.mxu0 0.0
        %611 = vmatpush1.msra.mxu0 0.0
        %612 = vmatprep.subr.mxu0 0.0
        %613 = vmatpush1.msra.mxu0 0.0
        %614 = vmatprep.subr.mxu0 0.0
        %615 = vmatpush1.msra.mxu0 0.0
        %616 = vmatprep.subr.mxu0 0.0
        %617 = vmatpush1.msra.mxu0 0.0
        %618 = vmatprep.mubr.f32.mxu0 0.0
        %619 = vmatmul.mubr.f32.gmra.mrb[0].mxu0 %v363
        %v620 = vpop.f32.mrb[0].mxu0
        %v621 = vadd.f32 0.0, %v620
        %v622 = vpop.f32.mrb[0].mxu0
        %623 = vmatprep.mubr.f32.mxu0 0.0
        %624 = vmatmul.mubr.f32.gmra.mrb[0].mxu0 %v366
        %v625 = vpop.f32.mrb[0].mxu0
        %v626 = vadd.f32 0.0, %v625
        %v627 = vpop.f32.mrb[0].mxu0
        %628 = vmatprep.mubr.f32.mxu0 0.0
        %629 = vmatmul.mubr.f32.gmra.mrb[0].mxu0 %v369
        %v630 = vpop.f32.mrb[0].mxu0
        %v631 = vadd.f32 0.0, %v630
        %v632 = vpop.f32.mrb[0].mxu0
        %633 = vmatprep.mubr.f32.mxu0 0.0
        %634 = vmatmul.mubr.f32.gmra.mrb[0].mxu0 %v372
        %v635 = vpop.f32.mrb[0].mxu0
        %v636 = vadd.f32 0.0, %v635
        %v637 = vpop.f32.mrb[0].mxu0
        %638 = vdwg.mxu0
        %s639 = scalar_lea.vmem %s217, 64 [#allocation8]
        %640 = vst.msk [vmem:[%s639] sm:$0xff] %vm459, %v621
        %641 = vst.msk [vmem:[%s639 + $0x8] sm:$0xff] %vm459, %v626
        %642 = vst.msk [vmem:[%s639 + $0x10] sm:$0xff] %vm459, %v631
        %643 = vst.msk [vmem:[%s639 + $0x18] sm:$0xff] %vm459, %v636
        %644 = vmatprep.subr.mxu0 0.0
        %645 = vmatpush1.msra.mxu0 %v350
        %646 = vmatprep.subr.mxu0 0.0
        %647 = vmatpush1.msra.mxu0 %v355
        %648 = vmatprep.subr.mxu0 0.0
        %649 = vmatpush1.msra.mxu0 0.0
        %650 = vmatprep.subr.mxu0 0.0
        %651 = vmatpush1.msra.mxu0 0.0
        %652 = vmatprep.subr.mxu0 0.0
        %653 = vmatpush1.msra.mxu0 0.0
        %654 = vmatprep.subr.mxu0 0.0
        %655 = vmatpush1.msra.mxu0 0.0
        %656 = vmatprep.subr.mxu0 0.0
        %657 = vmatpush1.msra.mxu0 0.0
        %658 = vmatprep.subr.mxu0 0.0
        %659 = vmatpush1.msra.mxu0 0.0
        %660 = vmatprep.subr.mxu0 0.0
        %661 = vmatpush1.msra.mxu0 0.0
        %662 = vmatprep.subr.mxu0 0.0
        %663 = vmatpush1.msra.mxu0 0.0
        %664 = vmatprep.subr.mxu0 0.0
        %665 = vmatpush1.msra.mxu0 0.0
        %666 = vmatprep.subr.mxu0 0.0
        %667 = vmatpush1.msra.mxu0 0.0
        %668 = vmatprep.subr.mxu0 0.0
        %669 = vmatpush1.msra.mxu0 0.0
        %670 = vmatprep.subr.mxu0 0.0
        %671 = vmatpush1.msra.mxu0 0.0
        %672 = vmatprep.subr.mxu0 0.0
        %673 = vmatpush1.msra.mxu0 0.0
        %674 = vmatprep.subr.mxu0 0.0
        %675 = vmatpush1.msra.mxu0 0.0
        %676 = vmatprep.subr.mxu0 0.0
        %677 = vmatpush1.msra.mxu0 0.0
        %678 = vmatprep.subr.mxu0 0.0
        %679 = vmatpush1.msra.mxu0 0.0
        %680 = vmatprep.subr.mxu0 0.0
        %681 = vmatpush1.msra.mxu0 0.0
        %682 = vmatprep.subr.mxu0 0.0
        %683 = vmatpush1.msra.mxu0 0.0
        %684 = vmatprep.subr.mxu0 0.0
        %685 = vmatpush1.msra.mxu0 0.0
        %686 = vmatprep.subr.mxu0 0.0
        %687 = vmatpush1.msra.mxu0 0.0
        %688 = vmatprep.subr.mxu0 0.0
        %689 = vmatpush1.msra.mxu0 0.0
        %690 = vmatprep.subr.mxu0 0.0
        %691 = vmatpush1.msra.mxu0 0.0
        %692 = vmatprep.subr.mxu0 0.0
        %693 = vmatpush1.msra.mxu0 0.0
        %694 = vmatprep.subr.mxu0 0.0
        %695 = vmatpush1.msra.mxu0 0.0
        %696 = vmatprep.subr.mxu0 0.0
        %697 = vmatpush1.msra.mxu0 0.0
        %698 = vmatprep.subr.mxu0 0.0
        %699 = vmatpush1.msra.mxu0 0.0
        %700 = vmatprep.subr.mxu0 0.0
        %701 = vmatpush1.msra.mxu0 0.0
        %702 = vmatprep.subr.mxu0 0.0
        %703 = vmatpush1.msra.mxu0 0.0
        %704 = vmatprep.subr.mxu0 0.0
        %705 = vmatpush1.msra.mxu0 0.0
        %706 = vmatprep.subr.mxu0 0.0
        %707 = vmatpush1.msra.mxu0 0.0
        %708 = vmatprep.mubr.f32.mxu0 0.0
        %709 = vmatmul.mubr.f32.gmra.mrb[0].mxu0 %v363
        %v710 = vpop.f32.mrb[0].mxu0
        %v711 = vadd.f32 0.0, %v710
        %v712 = vpop.f32.mrb[0].mxu0
        %713 = vmatprep.mubr.f32.mxu0 0.0
        %714 = vmatmul.mubr.f32.gmra.mrb[0].mxu0 %v366
        %v715 = vpop.f32.mrb[0].mxu0
        %v716 = vadd.f32 0.0, %v715
        %v717 = vpop.f32.mrb[0].mxu0
        %718 = vmatprep.mubr.f32.mxu0 0.0
        %719 = vmatmul.mubr.f32.gmra.mrb[0].mxu0 %v369
        %v720 = vpop.f32.mrb[0].mxu0
        %v721 = vadd.f32 0.0, %v720
        %v722 = vpop.f32.mrb[0].mxu0
        %723 = vmatprep.mubr.f32.mxu0 0.0
        %724 = vmatmul.mubr.f32.gmra.mrb[0].mxu0 %v372
        %v725 = vpop.f32.mrb[0].mxu0
        %v726 = vadd.f32 0.0, %v725
        %v727 = vpop.f32.mrb[0].mxu0
        %728 = vdwg.mxu0
        %s729 = scalar_lea.vmem %s217, 96 [#allocation8]
        %730 = vst.msk [vmem:[%s729] sm:$0xff] %vm459, %v711
        %731 = vst.msk [vmem:[%s729 + $0x8] sm:$0xff] %vm459, %v716
        %732 = vst.msk [vmem:[%s729 + $0x10] sm:$0xff] %vm459, %v721
        %733 = vst.msk [vmem:[%s729 + $0x18] sm:$0xff] %vm459, %v726
        %s734 = sand.u32 %s97, 1
        %s735 = scalar_lea.sflag [#allocation4], %s734
        %s736 = sand.u32 %s97, 1
        %s737 = smul.addr %s736, 128
        %s738 = scalar_lea.vmem [#allocation8], %s737
        // Predicated region
        $region45: #{tpu_custom_call.1} parent=31 // pred_check
          %p739 = pneg %p107
        $region46: #{tpu_custom_call.1} parent=31 // pred_check_branch
          %741 = sbr.rel (%p739) target = $region48
        $region47: #{tpu_custom_call.1} parent=31 // pred_region
          %s743 = ssub.s32 2048, 2048
          %744 = vsyncadd %s735, %s743
          %s745 = smul.addr %s21, 16
          %s746 = smul.addr %s745, 128
          %s747 = scalar_lea.hbm %s3, %s746
          %s748 = sshll.u32 %s738, 4
          %s749 = int_to_ptr.vmem [resolvable:$true] %s748
          %754 = dma.vmem_to_hbm [thread:$0]  %s749, 2048, %s747, %s735, 128, 128, 8
        $region48: #{tpu_custom_call.1} parent=31 // pred_fallthru
          _
      $region32: #{tpu_custom_call.1} parent=5 // pred_fallthru
        _
      %p755 = scmp.le.s32.totalorder 2, %s16
      // Predicated region
      $region49: #{tpu_custom_call.1} parent=5 // pred_check
        %p756 = pneg %p755
      $region50: #{tpu_custom_call.1} parent=5 // pred_check_branch
        %758 = sbr.rel (%p756) target = $region52
      $region51: #{tpu_custom_call.1} parent=5 // pred_region
        %s759 = ssub.s32 %s16, 2
        // Predicated region
        $region53: #{tpu_custom_call.1} parent=51 // pred_check
          %p760 = pneg %p113
        $region54: #{tpu_custom_call.1} parent=51 // pred_check_branch
          %762 = sbr.rel (%p760) target = $region56
        $region55: #{tpu_custom_call.1} parent=51 // pred_region
          %s763 = sand.u32 %s98, 1
          %s764 = scalar_lea.sflag [#allocation4], %s763
          %s765 = sand.u32 %s98, 1
          %s766 = smul.addr %s765, 128
          %s767 = scalar_lea.vmem [#allocation8], %s766
          %768 = dma.done %s764, 2048
        $region56: #{tpu_custom_call.1} parent=51 // pred_fallthru
          _
      $region52: #{tpu_custom_call.1} parent=5 // pred_fallthru
        _
    $region6: #{tpu_custom_call.1} parent=1 // loop_footer
      %s20 = sadd.s32 1, %s16
    $region7: #{tpu_custom_call.1} parent=1 // loop_footer_branch
      %15 = sbr.rel target = $region3
    $region8: #{tpu_custom_call.1} parent=1 // loop_exit
      _
    %769 = vsyncpa [#allocation3], 1
    %s770 = scalar_lea.sflag [#allocation3], 1
    %771 = vsyncpa %s770, 1
    %772 = vsyncpa [#allocation6], 1
    %773 = vsyncpa [#allocation4], 1
    %s774 = scalar_lea.sflag [#allocation4], 1
    %775 = vsyncpa %s774, 1

</llo_original>
